<compile_context>
chip_gen: v7x
topology: tpu7x:2x2x1
jax: 0.10.0
libtpu: 0.0.40
codegen_flags: <defaults>
</compile_context>

<pallas_src>
import math
import jax
import jax.numpy as jnp
from jax.experimental import pallas as pl
from jax.experimental.pallas import tpu as pltpu

_LANE = 128
_SUBLANE = 8


def _round_up(x, m):
    return (x + m - 1) // m * m


def _gelu_exact(x):
    # PyTorch nn.GELU() default = exact erf-based GELU (kept exact to preserve
    # module semantics).
    # TODO(synk): optional tanh-GELU (single EUP op) if profiling shows the erf
    # polynomial on the VPU is the binding slot once HBM traffic is minimized.
    return 0.5 * x * (1.0 + jax.lax.erf(x * (1.0 / math.sqrt(2.0))))


def flow_pis_kernel(s_ref, t_ref, w1_ref, b1_ref, w2_ref, b2_ref,
                    w3_ref, b3_ref, o_ref):
    # s/t: [TB, H] (unpadded features); w1: [H, H_pad]; w2: [H_pad, H_pad];
    # w3: [H_pad, OUT_pad]; b1/b2: [1, H_pad] f32; b3: [1, out_dim] f32;
    # o: [TB, out_dim] f32.  Elementwise math in f32, MXU operands in the
    # weights' dtype with f32 accumulation.
    cdt = w1_ref.dtype
    out_dim = o_ref.shape[1]
    x = _gelu_exact(s_ref[...].astype(jnp.float32) +
                    t_ref[...].astype(jnp.float32))
    x = _gelu_exact(
        jnp.dot(x.astype(cdt), w1_ref[...], preferred_element_type=jnp.float32)
        + b1_ref[...])
    x = _gelu_exact(
        jnp.dot(x.astype(cdt), w2_ref[...], preferred_element_type=jnp.float32)
        + b2_ref[...])
    y = jnp.dot(x.astype(cdt), w3_ref[...], preferred_element_type=jnp.float32)
    # Narrow writeback: store only the real output columns.
    o_ref[...] = (y[:, :out_dim] + b3_ref[...]).astype(o_ref.dtype)


def init_params(key, hidden_dim, out_dim, zero_init=False):
    """Deterministic init mimicking PyTorch Linear default (kaiming-uniform).
    Weights stored pre-transposed as [in, out]."""
    ks = jax.random.split(key, 6)

    def linear(kw, kb, fan_in, fan_out):
        bound = 1.0 / math.sqrt(fan_in)
        w = jax.random.uniform(kw, (fan_in, fan_out), jnp.float32, -bound, bound)
        b = jax.random.uniform(kb, (1, fan_out), jnp.float32, -bound, bound)
        return w, b

    w1, b1 = linear(ks[0], ks[1], hidden_dim, hidden_dim)
    w2, b2 = linear(ks[2], ks[3], hidden_dim, hidden_dim)
    w3, b3 = linear(ks[4], ks[5], hidden_dim, out_dim)
    if zero_init:
        w3 = jnp.zeros_like(w3)
        b3 = jnp.zeros_like(b3)
    return dict(w1=w1, b1=b1, w2=w2, b2=b2, w3=w3, b3=b3)


def prepare_params(params, compute_dtype=jnp.bfloat16):
    """One-time prep.  Hidden/output dims of the weights are zero-padded to
    lane multiples (exact: GELU(0)=0, zero rows/cols/biases) but w1's K dim
    stays at the true H so s/t stream unpadded.  Weights cast to the MXU
    compute dtype (pass jnp.float32 for an exact-f32 path); biases stay f32."""
    H = params["w1"].shape[0]
    OUT = params["w3"].shape[1]
    H_pad = _round_up(H, _LANE)
    OUT_pad = _round_up(OUT, _LANE)

    def pad2(a, rows, cols):
        return jnp.pad(a, ((0, rows - a.shape[0]), (0, cols - a.shape[1])))

    return dict(
        w1=pad2(params["w1"], H, H_pad).astype(compute_dtype),       # (H, H_pad)
        b1=pad2(params["b1"], 1, H_pad).astype(jnp.float32),
        w2=pad2(params["w2"], H_pad, H_pad).astype(compute_dtype),
        b2=pad2(params["b2"], 1, H_pad).astype(jnp.float32),
        w3=pad2(params["w3"], H_pad, OUT_pad).astype(compute_dtype),  # lane-dense MXU
        b3=params["b3"].astype(jnp.float32),                          # (1, OUT) unpadded
    )


def _choose_batch_tiling(B, block_b):
    """Pick (TB, B_pad, n_steps).  Prefers a TB (multiple of 8) that divides B
    exactly (no wrapper pad / post slice) and guarantees >= 2 grid steps when
    the batch allows it so both v7x TensorCores get work."""
    if B <= _SUBLANE:
        return B, B, 1
    B8 = _round_up(B, _SUBLANE)
    min_steps = 2 if B8 >= 2 * _SUBLANE else 1
    hi = min(block_b, B8 // min_steps)
    hi = max(_SUBLANE, hi - hi % _SUBLANE)
    if B8 == B:
        lo = max(_SUBLANE, hi // 2)
        cand = hi
        while cand >= lo:                 # compile-time scan, <= ~64 candidates
            if B % cand == 0:
                return cand, B, B // cand
            cand -= _SUBLANE
    # Fallback: minimal batch pad (< n_steps*8 + 8 rows).
    n_steps = max(min_steps, pl.cdiv(B8, block_b))
    TB = _round_up(pl.cdiv(B8, n_steps), _SUBLANE)
    return TB, n_steps * TB, n_steps


def _vmem_budget_bytes():
    cap = 64 * 1024 * 1024                 # conservative default (v7x-sized)
    try:
        info = pltpu.get_tpu_info()
        cap = int(getattr(info, "vmem_capacity_bytes", cap)) or cap
    except Exception:
        pass
    # ~80%: ~51 MiB on v7x (64 MiB/TC), ~102 MiB on v5e/v6e (128 MiB).
    return int(cap * 0.8)


def flow_model_pis(s, t, prep, *, block_b=1024):
    """s, t: [B, H].  prep: output of prepare_params.  Returns [B, out_dim] f32."""
    B, H = s.shape
    assert t.shape == s.shape
    H_pad = prep["w2"].shape[0]
    OUT_pad = prep["w3"].shape[1]
    out_dim = prep["b3"].shape[1]
    assert prep["w1"].shape == (H, H_pad), "prepare_params hidden dim mismatch"

    TB, B_pad, n_steps = _choose_batch_tiling(B, block_b)
    if B_pad != B:
        # Rare ragged-batch fallback (one extra pass over s/t).
        # TODO(synk): handle the ragged last tile in-kernel to drop this pad.
        s = jnp.pad(s, ((0, B_pad - B), (0, 0)))
        t = jnp.pad(t, ((0, B_pad - B), (0, 0)))

    w1, b1, w2, b2, w3, b3 = (prep[k] for k in ("w1", "b1", "w2", "b2", "w3", "b3"))

    # Advisory cost estimate for the XLA scheduler.
    flops = 2 * B_pad * (H * H_pad + H_pad * H_pad + H_pad * OUT_pad)
    transcendentals = B_pad * (H + 2 * H_pad)            # three erf-GELUs
    bytes_accessed = (s.nbytes + t.nbytes + w1.nbytes + b1.nbytes + w2.nbytes
                      + b2.nbytes + w3.nbytes + b3.nbytes + B_pad * out_dim * 4)
    cost = pl.CostEstimate(flops=flops, transcendentals=transcendentals,
                           bytes_accessed=bytes_accessed)

    # VMEM plan: resident weights + double-buffered s/t/out tiles + headroom
    # for f32 intermediates; capped per-generation via get_tpu_info.
    # TODO(synk): for very large H (>= ~2048 on v7x, ~4096 on v5e/v6e) add a
    # K-tiling grid axis ("arbitrary") with a VMEM accumulator instead of
    # fully-resident weights.
    weight_bytes = (w1.nbytes + b1.nbytes + w2.nbytes + b2.nbytes
                    + w3.nbytes + b3.nbytes)
    act_bytes = 2 * 2 * TB * H * 4
    out_bytes = 2 * TB * max(out_dim, 1) * 4
    interm_bytes = 4 * TB * H_pad * 4
    need = weight_bytes + act_bytes + out_bytes + interm_bytes
    vmem_limit = int(min(_vmem_budget_bytes(), max(32 * 1024 * 1024, 2 * need)))

    const = lambda i: (0, 0)   # weights/biases: same block every step -> VMEM-resident

    out = pl.pallas_call(
        flow_pis_kernel,
        out_shape=jax.ShapeDtypeStruct((B_pad, out_dim), jnp.float32),
        grid=(n_steps,),
        in_specs=[
            pl.BlockSpec((TB, H), lambda i: (i, 0)),        # s (unpadded features)
            pl.BlockSpec((TB, H), lambda i: (i, 0)),        # t
            pl.BlockSpec((H, H_pad), const),                # w1
            pl.BlockSpec((1, H_pad), const),                # b1
            pl.BlockSpec((H_pad, H_pad), const),            # w2
            pl.BlockSpec((1, H_pad), const),                # b2
            pl.BlockSpec((H_pad, OUT_pad), const),          # w3
            pl.BlockSpec((1, out_dim), const),              # b3
        ],
        out_specs=pl.BlockSpec((TB, out_dim), lambda i: (i, 0)),
        compiler_params=pltpu.CompilerParams(
            dimension_semantics=("parallel",),              # batch over v7x's 2 TCs
            vmem_limit_bytes=vmem_limit),
        cost_estimate=cost,
    )(s, t, w1, b1, w2, b2, w3, b3)

    return out if B_pad == B else out[:B]


def flow_model_pis_ref(s, t, p, compute_dtype=jnp.float32):
    """Plain-JAX reference.  compute_dtype=bf16 mirrors the kernel's MXU path."""
    def lin(x, w, b):
        return jnp.dot(x.astype(compute_dtype), w.astype(compute_dtype),
                       preferred_element_type=jnp.float32) + b
    x = _gelu_exact(s + t)
    x = _gelu_exact(lin(x, p["w1"], p["b1"]))
    x = _gelu_exact(lin(x, p["w2"], p["b2"]))
    return lin(x, p["w3"], p["b3"])


if __name__ == "__main__":
    # Small shapes consistent with the module: s_emb_dim == t_dim == hidden_dim.
    B, H, OUT = 64, 64, 1
    key = jax.random.PRNGKey(0)
    k_s, k_t, k_p, k_s2, k_t2 = jax.random.split(key, 5)
    s = jax.random.normal(k_s, (B, H), jnp.float32)
    t = jax.random.normal(k_t, (B, H), jnp.float32)
    params = init_params(k_p, H, OUT, zero_init=False)
    prep = prepare_params(params, compute_dtype=jnp.bfloat16)

    out = jax.block_until_ready(flow_model_pis(s, t, prep))
    assert out.shape == (B, OUT), out.shape

    # Check 1: plain-JAX reference on the same bf16-MXU / f32-accumulate path.
    ref_bf16 = flow_model_pis_ref(s, t, params, compute_dtype=jnp.bfloat16)
    assert jnp.allclose(out, ref_bf16, atol=1e-3, rtol=1e-3), (out, ref_bf16)

    # Check 2: exact f32 PyTorch-semantics reference (tolerance loosened for
    # the intentional bf16 MXU operands).
    ref_f32 = flow_model_pis_ref(s, t, params, compute_dtype=jnp.float32)
    assert jnp.allclose(out, ref_f32, atol=3e-2, rtol=3e-2), (out, ref_f32)

    # Check 3: ragged batch exercises the pad fallback + post-slice path.
    B2 = 13
    s2 = jax.random.normal(k_s2, (B2, H), jnp.float32)
    t2 = jax.random.normal(k_t2, (B2, H), jnp.float32)
    out2 = jax.block_until_ready(flow_model_pis(s2, t2, prep))
    ref2 = flow_model_pis_ref(s2, t2, params, compute_dtype=jnp.bfloat16)
    assert out2.shape == (B2, OUT), out2.shape
    assert jnp.allclose(out2, ref2, atol=1e-3, rtol=1e-3), (out2, ref2)

    print("KERNEL_OK")
</pallas_src>

<mosaic_0001>
module attributes {stable_mosaic.version = 11 : i64} {
  func.func @flow_pis_kernel(%arg0: i32, %arg1: memref<32x64xf32, #tpu.memory_space<vmem>>, %arg2: memref<32x64xf32, #tpu.memory_space<vmem>>, %arg3: memref<64x128xbf16, #tpu.memory_space<vmem>>, %arg4: memref<1x128xf32, #tpu.memory_space<vmem>>, %arg5: memref<128x128xbf16, #tpu.memory_space<vmem>>, %arg6: memref<1x128xf32, #tpu.memory_space<vmem>>, %arg7: memref<128x128xbf16, #tpu.memory_space<vmem>>, %arg8: memref<1x1xf32, #tpu.memory_space<vmem>>, %arg9: memref<32x1xf32, #tpu.memory_space<vmem>>) attributes {dimension_semantics = [#tpu.dimension_semantics<parallel>], iteration_bounds = array<i64: 2>, scalar_prefetch = 0 : i64, scratch_operands = 0 : i64, tpu.core_type = #tpu.core_type<tc>, window_params = [{transform_indices = @transform_0, window_bounds = array<i64: 32, 64>}, {transform_indices = @transform_1, window_bounds = array<i64: 32, 64>}, {pipeline_mode = #tpu.pipeline_mode<synchronous>, transform_indices = @transform_2, window_bounds = array<i64: 64, 128>}, {pipeline_mode = #tpu.pipeline_mode<synchronous>, transform_indices = @transform_3, window_bounds = array<i64: 1, 128>}, {pipeline_mode = #tpu.pipeline_mode<synchronous>, transform_indices = @transform_4, window_bounds = array<i64: 128, 128>}, {pipeline_mode = #tpu.pipeline_mode<synchronous>, transform_indices = @transform_5, window_bounds = array<i64: 1, 128>}, {pipeline_mode = #tpu.pipeline_mode<synchronous>, transform_indices = @transform_6, window_bounds = array<i64: 128, 128>}, {pipeline_mode = #tpu.pipeline_mode<synchronous>, transform_indices = @transform_7, window_bounds = array<i64: 1, 1>}, {transform_indices = @transform_8, window_bounds = array<i64: 32, 1>}]} {
    %c0 = arith.constant 0 : index
    %c0_0 = arith.constant 0 : index
    %0 = vector.load %arg1[%c0, %c0_0] : memref<32x64xf32, #tpu.memory_space<vmem>>, vector<32x64xf32>
    %c0_1 = arith.constant 0 : index
    %c0_2 = arith.constant 0 : index
    %1 = vector.load %arg2[%c0_1, %c0_2] : memref<32x64xf32, #tpu.memory_space<vmem>>, vector<32x64xf32>
    %2 = arith.addf %0, %1 : vector<32x64xf32>
    %cst = arith.constant 5.000000e-01 : f32
    %3 = vector.broadcast %cst : f32 to vector<32x64xf32>
    %4 = arith.mulf %3, %2 : vector<32x64xf32>
    %cst_3 = arith.constant 0.707106769 : f32
    %5 = vector.broadcast %cst_3 : f32 to vector<32x64xf32>
    %6 = arith.mulf %2, %5 : vector<32x64xf32>
    %7 = math.erf %6 : vector<32x64xf32>
    %cst_4 = arith.constant 1.000000e+00 : f32
    %8 = vector.broadcast %cst_4 : f32 to vector<32x64xf32>
    %9 = arith.addf %8, %7 : vector<32x64xf32>
    %10 = arith.mulf %4, %9 : vector<32x64xf32>
    %11 = arith.truncf %10 : vector<32x64xf32> to vector<32x64xbf16>
    %c0_5 = arith.constant 0 : index
    %c0_6 = arith.constant 0 : index
    %12 = vector.load %arg3[%c0_5, %c0_6] : memref<64x128xbf16, #tpu.memory_space<vmem>>, vector<64x128xbf16>
    %cst_7 = arith.constant dense<0.000000e+00> : vector<32x128xf32>
    %13 = tpu.matmul %11, %12, %cst_7 {dimension_numbers = #tpu.dot_dimension_numbers<[1], [0], [0], [1], [0, 0, 1, 1], [], []>} : vector<32x64xbf16>, vector<64x128xbf16>, vector<32x128xf32> -> vector<32x128xf32>
    %c0_8 = arith.constant 0 : index
    %c0_9 = arith.constant 0 : index
    %14 = vector.load %arg4[%c0_8, %c0_9] : memref<1x128xf32, #tpu.memory_space<vmem>>, vector<1x128xf32>
    %15 = vector.broadcast %14 : vector<1x128xf32> to vector<32x128xf32>
    %16 = arith.addf %13, %15 : vector<32x128xf32>
    %cst_10 = arith.constant 5.000000e-01 : f32
    %17 = vector.broadcast %cst_10 : f32 to vector<32x128xf32>
    %18 = arith.mulf %17, %16 : vector<32x128xf32>
    %cst_11 = arith.constant 0.707106769 : f32
    %19 = vector.broadcast %cst_11 : f32 to vector<32x128xf32>
    %20 = arith.mulf %16, %19 : vector<32x128xf32>
    %21 = math.erf %20 : vector<32x128xf32>
    %cst_12 = arith.constant 1.000000e+00 : f32
    %22 = vector.broadcast %cst_12 : f32 to vector<32x128xf32>
    %23 = arith.addf %22, %21 : vector<32x128xf32>
    %24 = arith.mulf %18, %23 : vector<32x128xf32>
    %25 = arith.truncf %24 : vector<32x128xf32> to vector<32x128xbf16>
    %c0_13 = arith.constant 0 : index
    %c0_14 = arith.constant 0 : index
    %26 = vector.load %arg5[%c0_13, %c0_14] : memref<128x128xbf16, #tpu.memory_space<vmem>>, vector<128x128xbf16>
    %cst_15 = arith.constant dense<0.000000e+00> : vector<32x128xf32>
    %27 = tpu.matmul %25, %26, %cst_15 {dimension_numbers = #tpu.dot_dimension_numbers<[1], [0], [0], [1], [0, 0, 1, 1], [], []>} : vector<32x128xbf16>, vector<128x128xbf16>, vector<32x128xf32> -> vector<32x128xf32>
    %c0_16 = arith.constant 0 : index
    %c0_17 = arith.constant 0 : index
    %28 = vector.load %arg6[%c0_16, %c0_17] : memref<1x128xf32, #tpu.memory_space<vmem>>, vector<1x128xf32>
    %29 = vector.broadcast %28 : vector<1x128xf32> to vector<32x128xf32>
    %30 = arith.addf %27, %29 : vector<32x128xf32>
    %cst_18 = arith.constant 5.000000e-01 : f32
    %31 = vector.broadcast %cst_18 : f32 to vector<32x128xf32>
    %32 = arith.mulf %31, %30 : vector<32x128xf32>
    %cst_19 = arith.constant 0.707106769 : f32
    %33 = vector.broadcast %cst_19 : f32 to vector<32x128xf32>
    %34 = arith.mulf %30, %33 : vector<32x128xf32>
    %35 = math.erf %34 : vector<32x128xf32>
    %cst_20 = arith.constant 1.000000e+00 : f32
    %36 = vector.broadcast %cst_20 : f32 to vector<32x128xf32>
    %37 = arith.addf %36, %35 : vector<32x128xf32>
    %38 = arith.mulf %32, %37 : vector<32x128xf32>
    %39 = arith.truncf %38 : vector<32x128xf32> to vector<32x128xbf16>
    %c0_21 = arith.constant 0 : index
    %c0_22 = arith.constant 0 : index
    %40 = vector.load %arg7[%c0_21, %c0_22] : memref<128x128xbf16, #tpu.memory_space<vmem>>, vector<128x128xbf16>
    %cst_23 = arith.constant dense<0.000000e+00> : vector<32x128xf32>
    %41 = tpu.matmul %39, %40, %cst_23 {dimension_numbers = #tpu.dot_dimension_numbers<[1], [0], [0], [1], [0, 0, 1, 1], [], []>} : vector<32x128xbf16>, vector<128x128xbf16>, vector<32x128xf32> -> vector<32x128xf32>
    %42 = vector.extract_strided_slice %41 {offsets = [0, 0], sizes = [32, 1], strides = [1, 1]} : vector<32x128xf32> to vector<32x1xf32>
    %c0_24 = arith.constant 0 : index
    %c0_25 = arith.constant 0 : index
    %43 = vector.load %arg8[%c0_24, %c0_25] : memref<1x1xf32, #tpu.memory_space<vmem>>, vector<1x1xf32>
    %44 = vector.broadcast %43 : vector<1x1xf32> to vector<32x1xf32>
    %45 = arith.addf %42, %44 : vector<32x1xf32>
    %c0_26 = arith.constant 0 : index
    %c0_27 = arith.constant 0 : index
    %46 = vector.load %arg9[%c0_26, %c0_27] : memref<32x1xf32, #tpu.memory_space<vmem>>, vector<32x1xf32>
    tpu.vector_store %arg9[%c0_26, %c0_27], %45 {strides = array<i32>} : memref<32x1xf32, #tpu.memory_space<vmem>>, vector<32x1xf32>,
    return
  }
  func.func @transform_0(%arg0: i32) -> (i32, i32) {
    %c0_i32 = arith.constant 0 : i32
    %c0_i32_0 = arith.constant 0 : i32
    return %arg0, %c0_i32 : i32, i32
  }
  func.func @transform_1(%arg0: i32) -> (i32, i32) {
    %c0_i32 = arith.constant 0 : i32
    %c0_i32_0 = arith.constant 0 : i32
    return %arg0, %c0_i32 : i32, i32
  }
  func.func @transform_2(%arg0: i32) -> (i32, i32) {
    %c0_i32 = arith.constant 0 : i32
    %c0_i32_0 = arith.constant 0 : i32
    %c0_i32_1 = arith.constant 0 : i32
    return %c0_i32, %c0_i32_0 : i32, i32
  }
  func.func @transform_3(%arg0: i32) -> (i32, i32) {
    %c0_i32 = arith.constant 0 : i32
    %c0_i32_0 = arith.constant 0 : i32
    %c0_i32_1 = arith.constant 0 : i32
    return %c0_i32, %c0_i32_0 : i32, i32
  }
  func.func @transform_4(%arg0: i32) -> (i32, i32) {
    %c0_i32 = arith.constant 0 : i32
    %c0_i32_0 = arith.constant 0 : i32
    %c0_i32_1 = arith.constant 0 : i32
    return %c0_i32, %c0_i32_0 : i32, i32
  }
  func.func @transform_5(%arg0: i32) -> (i32, i32) {
    %c0_i32 = arith.constant 0 : i32
    %c0_i32_0 = arith.constant 0 : i32
    %c0_i32_1 = arith.constant 0 : i32
    return %c0_i32, %c0_i32_0 : i32, i32
  }
  func.func @transform_6(%arg0: i32) -> (i32, i32) {
    %c0_i32 = arith.constant 0 : i32
    %c0_i32_0 = arith.constant 0 : i32
    %c0_i32_1 = arith.constant 0 : i32
    return %c0_i32, %c0_i32_0 : i32, i32
  }
  func.func @transform_7(%arg0: i32) -> (i32, i32) {
    %c0_i32 = arith.constant 0 : i32
    %c0_i32_0 = arith.constant 0 : i32
    %c0_i32_1 = arith.constant 0 : i32
    return %c0_i32, %c0_i32_0 : i32, i32
  }
  func.func @transform_8(%arg0: i32) -> (i32, i32) {
    %c0_i32 = arith.constant 0 : i32
    %c0_i32_0 = arith.constant 0 : i32
    return %arg0, %c0_i32 : i32, i32
  }
}

</mosaic_0001>

<llo_original>
// kernel: tpu_custom_call.1
$region0: #{tpu_custom_call.1}
  #allocation0 [shape = 'u32[]', space=smem, size = 0x4, offset = 0x4, fixed_abs, tag = 'smem constant byte address 0x4 - core index']
  #allocation1 [shape = 'u32[144,128]{1,0:T(1,128)}', space=vmem, size = 0x12000, scoped, tag = 'internal scratch']
  #allocation2 [shape = 'f32[1,1]{1,0:T(1,128)S(1)}', space=vmem, size = 0x200, scoped, tag = 'scoped memory for tpu_custom_call.1']
  %s0 = inlined_call_operand.hbm [shape: f32[64,64], index: 0, kind: input, shape index: {}]
  %s1 = inlined_call_operand.hbm [shape: f32[64,64], index: 1, kind: input, shape index: {}]
  %s2 = inlined_call_operand.hbm [shape: bf16[64,128], index: 2, kind: input, shape index: {}]
  %s3 = inlined_call_operand.vmem [shape: f32[1,128], index: 3, kind: input, shape index: {}]
  %s4 = inlined_call_operand.hbm [shape: bf16[128,128], index: 4, kind: input, shape index: {}]
  %s5 = inlined_call_operand.vmem [shape: f32[1,128], index: 5, kind: input, shape index: {}]
  %s6 = inlined_call_operand.hbm [shape: bf16[128,128], index: 6, kind: input, shape index: {}]
  %s7 = inlined_call_operand.<no memory space> [shape: f32[1,1], index: 7, kind: input, shape index: {}]
  %s8 = inlined_call_operand.vmem [shape: f32[64,1], index: 8, kind: output, shape index: {}]
  %s9 = sld [smem:[#allocation0]]
  $region85: #{tpu_custom_call.1} parent=0
    _
  %s11 = ssub.s32 1, %s9
  %s12 = scalar_select 0, %s11, %s9
  %v13 = vstv %s7
  %14 = vst [vmem:[#allocation2] sm:$0x1] %v13
  $region1: #{tpu_custom_call.1} parent=0
    #allocation3 [shape = 'u8[32768]{0}', space=vmem, size = 0x8000, scoped, tag = 'input window, operand 0']
    #allocation4 [shape = 's32[2]{0}', space=sflag, size = 0x8, scoped, tag = 'scoped memory for tpu_custom_call.1']
    #allocation5 [shape = 'u8[32768]{0}', space=vmem, size = 0x8000, scoped, tag = 'input window, operand 1']
    #allocation6 [shape = 's32[2]{0}', space=sflag, size = 0x8, scoped, tag = 'scoped memory for tpu_custom_call.1']
    #allocation7 [shape = 'u8[16384]{0}', space=vmem, size = 0x4000, scoped, tag = 'input window, operand 2, single buffered']
    #allocation8 [shape = 'u8[32768]{0}', space=vmem, size = 0x8000, scoped, tag = 'input window, operand 4, single buffered']
    #allocation9 [shape = 's32[1]{0}', space=sflag, size = 0x4, scoped, tag = 'scoped memory for tpu_custom_call.1']
    #allocation10 [shape = 'u8[32768]{0}', space=vmem, size = 0x8000, scoped, tag = 'input window, operand 6, single buffered']
    %15 = vsyncpa [#allocation4], 0
    %s16 = scalar_lea.sflag [#allocation4], 1
    %17 = vsyncpa %s16, 0
    %18 = vsyncpa [#allocation6], 0
    %s19 = scalar_lea.sflag [#allocation6], 1
    %20 = vsyncpa %s19, 0
    %21 = vsyncpa [#allocation9], 0
    loop: start=0, step=1, limit=4
    $region2: #{tpu_custom_call.1} parent=1 // loop_pre_header
      _
    $region3: #{tpu_custom_call.1} parent=1 // loop_header
      %s23 = sphi 0, %s27
      %p24 = scmp.ge.s32.totalorder %s23, 4
      %s33 = sphi 0, %s35
      %s36 = sphi 0, %s33
      %s37 = sphi 0, %s36
      %s53 = sphi 0, %s37
      %s59 = sphi 0, %s61
      %s62 = sphi 0, %s59
      %s63 = sphi 0, %s62
      %s79 = sphi 0, %s63
      %s83 = sphi 0, %s83
      %s85 = sphi 0, %s83
      %s86 = sphi 0, %s85
      %s100 = sphi 0, %s86
      %s104 = sphi 0, %s104
      %s106 = sphi 0, %s104
      %s107 = sphi 0, %s106
      %s121 = sphi 0, %s107
      %s125 = sphi 0, %s125
      %s127 = sphi 0, %s125
      %s128 = sphi 0, %s127
      %s142 = sphi 0, %s128
      %s146 = sphi 0, %s146
      %s148 = sphi 0, %s146
      %s149 = sphi 0, %s148
      %s163 = sphi 0, %s149
      %s167 = sphi 0, %s167
      %s169 = sphi 0, %s167
      %s170 = sphi 0, %s169
      %s184 = sphi 0, %s170
      %s188 = sphi 0, %s188
      %s190 = sphi 0, %s188
      %s191 = sphi 0, %s190
      %s205 = sphi 0, %s191
      %s211 = sphi 0, %s213
      %s214 = sphi 0, %s211
      %s215 = sphi 0, %s214
      %s231 = sphi 0, %s215
    $region4: #{tpu_custom_call.1} parent=1 // loop_header_branch
      %26 = sbr.rel (%p24) target = $region8
    $region5: #{tpu_custom_call.1} parent=1 // loop_body
      %s28 = ssub.s32 %s23, 1
      %s29 = ssub.s32 %s23, 2
      %s30 = sadd.s32 %s23, 1
      %s31 = ssub.s32 %s23, %s30
      %p32 = scmp.eq.s32.totalorder %s31, 0
      %s34 = sadd.s32 %s33, 1
      %s35 = scalar_select %p32, %s33, %s34
      %p38 = pneg %p32
      %p39 = scmp.eq.s32.totalorder %s23, 1
      %p40 = por %p38, %p39
      %p41 = scmp.ne.s32.totalorder %s33, %s36
      %p42 = scmp.eq.s32.totalorder %s23, 0
      %p43 = por %p41, %p42
      %p44 = scmp.ne.s32.totalorder %s33, %s36
      %p45 = scmp.eq.s32.totalorder %s28, 1
      %p46 = por %p44, %p45
      %p47 = scmp.ne.s32.totalorder %s36, %s37
      %p48 = scmp.eq.s32.totalorder %s28, 0
      %p49 = por %p47, %p48
      %p50 = scmp.ne.s32.totalorder %s36, %s37
      %p51 = scmp.eq.s32.totalorder %s29, 1
      %p52 = por %p50, %p51
      %p54 = scmp.ne.s32.totalorder %s37, %s53
      %p55 = scmp.eq.s32.totalorder %s29, 0
      %p56 = por %p54, %p55
      %s57 = ssub.s32 %s23, %s30
      %p58 = scmp.eq.s32.totalorder %s57, 0
      %s60 = sadd.s32 %s59, 1
      %s61 = scalar_select %p58, %s59, %s60
      %p64 = pneg %p58
      %p65 = scmp.eq.s32.totalorder %s23, 1
      %p66 = por %p64, %p65
      %p67 = scmp.ne.s32.totalorder %s59, %s62
      %p68 = scmp.eq.s32.totalorder %s23, 0
      %p69 = por %p67, %p68
      %p70 = scmp.ne.s32.totalorder %s59, %s62
      %p71 = scmp.eq.s32.totalorder %s28, 1
      %p72 = por %p70, %p71
      %p73 = scmp.ne.s32.totalorder %s62, %s63
      %p74 = scmp.eq.s32.totalorder %s28, 0
      %p75 = por %p73, %p74
      %p76 = scmp.ne.s32.totalorder %s62, %s63
      %p77 = scmp.eq.s32.totalorder %s29, 1
      %p78 = por %p76, %p77
      %p80 = scmp.ne.s32.totalorder %s63, %s79
      %p81 = scmp.eq.s32.totalorder %s29, 0
      %p82 = por %p80, %p81
      %s84 = sadd.s32 %s83, 1
      %p87 = scmp.eq.s32.totalorder %s23, 1
      %p88 = scmp.ne.s32.totalorder %s83, %s85
      %p89 = scmp.eq.s32.totalorder %s23, 0
      %p90 = por %p88, %p89
      %p91 = scmp.ne.s32.totalorder %s83, %s85
      %p92 = scmp.eq.s32.totalorder %s28, 1
      %p93 = por %p91, %p92
      %p94 = scmp.ne.s32.totalorder %s85, %s86
      %p95 = scmp.eq.s32.totalorder %s28, 0
      %p96 = por %p94, %p95
      %p97 = scmp.ne.s32.totalorder %s85, %s86
      %p98 = scmp.eq.s32.totalorder %s29, 1
      %p99 = por %p97, %p98
      %p101 = scmp.ne.s32.totalorder %s86, %s100
      %p102 = scmp.eq.s32.totalorder %s29, 0
      %p103 = por %p101, %p102
      %s105 = sadd.s32 %s104, 1
      %p108 = scmp.eq.s32.totalorder %s23, 1
      %p109 = scmp.ne.s32.totalorder %s104, %s106
      %p110 = scmp.eq.s32.totalorder %s23, 0
      %p111 = por %p109, %p110
      %p112 = scmp.ne.s32.totalorder %s104, %s106
      %p113 = scmp.eq.s32.totalorder %s28, 1
      %p114 = por %p112, %p113
      %p115 = scmp.ne.s32.totalorder %s106, %s107
      %p116 = scmp.eq.s32.totalorder %s28, 0
      %p117 = por %p115, %p116
      %p118 = scmp.ne.s32.totalorder %s106, %s107
      %p119 = scmp.eq.s32.totalorder %s29, 1
      %p120 = por %p118, %p119
      %p122 = scmp.ne.s32.totalorder %s107, %s121
      %p123 = scmp.eq.s32.totalorder %s29, 0
      %p124 = por %p122, %p123
      %s126 = sadd.s32 %s125, 1
      %p129 = scmp.eq.s32.totalorder %s23, 1
      %p130 = scmp.ne.s32.totalorder %s125, %s127
      %p131 = scmp.eq.s32.totalorder %s23, 0
      %p132 = por %p130, %p131
      %p133 = scmp.ne.s32.totalorder %s125, %s127
      %p134 = scmp.eq.s32.totalorder %s28, 1
      %p135 = por %p133, %p134
      %p136 = scmp.ne.s32.totalorder %s127, %s128
      %p137 = scmp.eq.s32.totalorder %s28, 0
      %p138 = por %p136, %p137
      %p139 = scmp.ne.s32.totalorder %s127, %s128
      %p140 = scmp.eq.s32.totalorder %s29, 1
      %p141 = por %p139, %p140
      %p143 = scmp.ne.s32.totalorder %s128, %s142
      %p144 = scmp.eq.s32.totalorder %s29, 0
      %p145 = por %p143, %p144
      %s147 = sadd.s32 %s146, 1
      %p150 = scmp.eq.s32.totalorder %s23, 1
      %p151 = scmp.ne.s32.totalorder %s146, %s148
      %p152 = scmp.eq.s32.totalorder %s23, 0
      %p153 = por %p151, %p152
      %p154 = scmp.ne.s32.totalorder %s146, %s148
      %p155 = scmp.eq.s32.totalorder %s28, 1
      %p156 = por %p154, %p155
      %p157 = scmp.ne.s32.totalorder %s148, %s149
      %p158 = scmp.eq.s32.totalorder %s28, 0
      %p159 = por %p157, %p158
      %p160 = scmp.ne.s32.totalorder %s148, %s149
      %p161 = scmp.eq.s32.totalorder %s29, 1
      %p162 = por %p160, %p161
      %p164 = scmp.ne.s32.totalorder %s149, %s163
      %p165 = scmp.eq.s32.totalorder %s29, 0
      %p166 = por %p164, %p165
      %s168 = sadd.s32 %s167, 1
      %p171 = scmp.eq.s32.totalorder %s23, 1
      %p172 = scmp.ne.s32.totalorder %s167, %s169
      %p173 = scmp.eq.s32.totalorder %s23, 0
      %p174 = por %p172, %p173
      %p175 = scmp.ne.s32.totalorder %s167, %s169
      %p176 = scmp.eq.s32.totalorder %s28, 1
      %p177 = por %p175, %p176
      %p178 = scmp.ne.s32.totalorder %s169, %s170
      %p179 = scmp.eq.s32.totalorder %s28, 0
      %p180 = por %p178, %p179
      %p181 = scmp.ne.s32.totalorder %s169, %s170
      %p182 = scmp.eq.s32.totalorder %s29, 1
      %p183 = por %p181, %p182
      %p185 = scmp.ne.s32.totalorder %s170, %s184
      %p186 = scmp.eq.s32.totalorder %s29, 0
      %p187 = por %p185, %p186
      %s189 = sadd.s32 %s188, 1
      %p192 = scmp.eq.s32.totalorder %s23, 1
      %p193 = scmp.ne.s32.totalorder %s188, %s190
      %p194 = scmp.eq.s32.totalorder %s23, 0
      %p195 = por %p193, %p194
      %p196 = scmp.ne.s32.totalorder %s188, %s190
      %p197 = scmp.eq.s32.totalorder %s28, 1
      %p198 = por %p196, %p197
      %p199 = scmp.ne.s32.totalorder %s190, %s191
      %p200 = scmp.eq.s32.totalorder %s28, 0
      %p201 = por %p199, %p200
      %p202 = scmp.ne.s32.totalorder %s190, %s191
      %p203 = scmp.eq.s32.totalorder %s29, 1
      %p204 = por %p202, %p203
      %p206 = scmp.ne.s32.totalorder %s191, %s205
      %p207 = scmp.eq.s32.totalorder %s29, 0
      %p208 = por %p206, %p207
      %s209 = ssub.s32 %s23, %s30
      %p210 = scmp.eq.s32.totalorder %s209, 0
      %s212 = sadd.s32 %s211, 1
      %s213 = scalar_select %p210, %s211, %s212
      %p216 = pneg %p210
      %p217 = scmp.eq.s32.totalorder %s23, 1
      %p218 = por %p216, %p217
      %p219 = scmp.ne.s32.totalorder %s211, %s214
      %p220 = scmp.eq.s32.totalorder %s23, 0
      %p221 = por %p219, %p220
      %p222 = scmp.ne.s32.totalorder %s211, %s214
      %p223 = scmp.eq.s32.totalorder %s28, 1
      %p224 = por %p222, %p223
      %p225 = scmp.ne.s32.totalorder %s214, %s215
      %p226 = scmp.eq.s32.totalorder %s28, 0
      %p227 = por %p225, %p226
      %p228 = scmp.ne.s32.totalorder %s214, %s215
      %p229 = scmp.eq.s32.totalorder %s29, 1
      %p230 = por %p228, %p229
      %p232 = scmp.ne.s32.totalorder %s215, %s231
      %p233 = scmp.eq.s32.totalorder %s29, 0
      %p234 = por %p232, %p233
      %p235 = scmp.le.s32.totalorder 1, %s23
      %p236 = scmp.lt.s32.totalorder %s23, 3
      %p237 = pnand %p235, %p236
      %p238 = pneg %p237
      // Predicated region
      $region9: #{tpu_custom_call.1} parent=5 // pred_check
        _
      $region10: #{tpu_custom_call.1} parent=5 // pred_check_branch
        %240 = sbr.rel (%p237) target = $region12
      $region11: #{tpu_custom_call.1} parent=5 // pred_region
        %s241 = ssub.s32 %s23, 1
        // Predicated region
        $region13: #{tpu_custom_call.1} parent=11 // pred_check
          %p242 = pneg %p96
        $region14: #{tpu_custom_call.1} parent=11 // pred_check_branch
          %244 = sbr.rel (%p242) target = $region16
        $region15: #{tpu_custom_call.1} parent=11 // pred_region
          %s246 = ssub.s32 512, 512
          %247 = vsyncadd [#allocation6], %s246
          %s248 = sshll.u32 [#allocation7], 4
          %s249 = int_to_ptr.vmem [resolvable:$true] %s248
          %254 = dma.hbm_to_vmem [thread:$0]  %s2, 512, %s249, [#allocation6], 64, 64, 4
        $region16: #{tpu_custom_call.1} parent=11 // pred_fallthru
          _
        // Predicated region
        $region17: #{tpu_custom_call.1} parent=11 // pred_check
          %p255 = pneg %p117
        $region18: #{tpu_custom_call.1} parent=11 // pred_check_branch
          %257 = sbr.rel (%p255) target = $region20
        $region19: #{tpu_custom_call.1} parent=11 // pred_region
          _
        $region20: #{tpu_custom_call.1} parent=11 // pred_fallthru
          _
        // Predicated region
        $region21: #{tpu_custom_call.1} parent=11 // pred_check
          %p258 = pneg %p138
        $region22: #{tpu_custom_call.1} parent=11 // pred_check_branch
          %260 = sbr.rel (%p258) target = $region24
        $region23: #{tpu_custom_call.1} parent=11 // pred_region
          %s262 = ssub.s32 1024, 1024
          %263 = vsyncadd [#allocation9], %s262
          %s264 = sshll.u32 [#allocation8], 4
          %s265 = int_to_ptr.vmem [resolvable:$true] %s264
          %270 = dma.hbm_to_vmem [thread:$0]  %s4, 1024, %s265, [#allocation9], 64, 64, 4
        $region24: #{tpu_custom_call.1} parent=11 // pred_fallthru
          _
        // Predicated region
        $region25: #{tpu_custom_call.1} parent=11 // pred_check
          %p271 = pneg %p159
        $region26: #{tpu_custom_call.1} parent=11 // pred_check_branch
          %273 = sbr.rel (%p271) target = $region28
        $region27: #{tpu_custom_call.1} parent=11 // pred_region
          _
        $region28: #{tpu_custom_call.1} parent=11 // pred_fallthru
          _
        // Predicated region
        $region29: #{tpu_custom_call.1} parent=11 // pred_check
          %p274 = pneg %p180
        $region30: #{tpu_custom_call.1} parent=11 // pred_check_branch
          %276 = sbr.rel (%p274) target = $region32
        $region31: #{tpu_custom_call.1} parent=11 // pred_region
          %s278 = ssub.s32 1024, 1024
          %279 = vsyncadd [#allocation9], %s278
          %s280 = sshll.u32 [#allocation10], 4
          %s281 = int_to_ptr.vmem [resolvable:$true] %s280
          %286 = dma.hbm_to_vmem [thread:$0]  %s6, 1024, %s281, [#allocation9], 64, 64, 4
        $region32: #{tpu_custom_call.1} parent=11 // pred_fallthru
          _
        // Predicated region
        $region33: #{tpu_custom_call.1} parent=11 // pred_check
          %p287 = pneg %p201
        $region34: #{tpu_custom_call.1} parent=11 // pred_check_branch
          %289 = sbr.rel (%p287) target = $region36
        $region35: #{tpu_custom_call.1} parent=11 // pred_region
          _
        $region36: #{tpu_custom_call.1} parent=11 // pred_fallthru
          _
      $region12: #{tpu_custom_call.1} parent=5 // pred_fallthru
        _
      %p290 = scmp.lt.s32.totalorder %s23, 2
      // Predicated region
      $region37: #{tpu_custom_call.1} parent=5 // pred_check
        %p291 = pneg %p290
      $region38: #{tpu_custom_call.1} parent=5 // pred_check_branch
        %293 = sbr.rel (%p291) target = $region40
      $region39: #{tpu_custom_call.1} parent=5 // pred_region
        // Predicated region
        $region41: #{tpu_custom_call.1} parent=39 // pred_check
          %p294 = pneg %p43
        $region42: #{tpu_custom_call.1} parent=39 // pred_check_branch
          %296 = sbr.rel (%p294) target = $region44
        $region43: #{tpu_custom_call.1} parent=39 // pred_region
          %s297 = sand.u32 %s33, 1
          %s298 = scalar_lea.sflag [#allocation4], %s297
          %s299 = sand.u32 %s33, 1
          %s300 = smul.addr %s299, 32
          %s301 = scalar_lea.vmem [#allocation3], %s300
          %s302 = smul.u32 4, %s23
          %s304 = ssub.s32 512, 512
          %305 = vsyncadd %s298, %s304
          %s306 = smul.addr %s302, 128
          %s307 = scalar_lea.hbm %s0, %s306
          %s308 = sshll.u32 %s301, 4
          %s309 = int_to_ptr.vmem [resolvable:$true] %s308
          %314 = dma.hbm_to_vmem [thread:$0]  %s307, 512, %s309, %s298, 128, 128, 8
        $region44: #{tpu_custom_call.1} parent=39 // pred_fallthru
          _
        // Predicated region
        $region45: #{tpu_custom_call.1} parent=39 // pred_check
          %p315 = pneg %p69
        $region46: #{tpu_custom_call.1} parent=39 // pred_check_branch
          %317 = sbr.rel (%p315) target = $region48
        $region47: #{tpu_custom_call.1} parent=39 // pred_region
          %s318 = sand.u32 %s23, 1
          %s319 = scalar_lea.sflag [#allocation6], %s318
          %s320 = sand.u32 %s59, 1
          %s321 = smul.addr %s320, 32
          %s322 = scalar_lea.vmem [#allocation5], %s321
          %s323 = smul.u32 4, %s23
          %s325 = ssub.s32 512, 512
          %326 = vsyncadd %s319, %s325
          %s327 = smul.addr %s323, 128
          %s328 = scalar_lea.hbm %s1, %s327
          %s329 = sshll.u32 %s322, 4
          %s330 = int_to_ptr.vmem [resolvable:$true] %s329
          %335 = dma.hbm_to_vmem [thread:$0]  %s328, 512, %s330, %s319, 128, 128, 8
        $region48: #{tpu_custom_call.1} parent=39 // pred_fallthru
          _
      $region40: #{tpu_custom_call.1} parent=5 // pred_fallthru
        _
      %p336 = scmp.le.s32.totalorder 1, %s23
      %p337 = scmp.lt.s32.totalorder %s23, 3
      %p338 = pnand %p336, %p337
      %p339 = pneg %p338
      // Predicated region
      $region49: #{tpu_custom_call.1} parent=5 // pred_check
        _
      $region50: #{tpu_custom_call.1} parent=5 // pred_check_branch
        %341 = sbr.rel (%p338) target = $region52
      $region51: #{tpu_custom_call.1} parent=5 // pred_region
        %s342 = ssub.s32 %s23, 1
        %s343 = sand.u32 %s36, 1
        %s344 = scalar_lea.sflag [#allocation4], %s343
        %s345 = sand.u32 %s36, 1
        %s346 = smul.addr %s345, 32
        %s347 = scalar_lea.vmem [#allocation3], %s346
        // Predicated region
        $region53: #{tpu_custom_call.1} parent=51 // pred_check
          %p348 = pneg %p49
        $region54: #{tpu_custom_call.1} parent=51 // pred_check_branch
          %350 = sbr.rel (%p348) target = $region56
        $region55: #{tpu_custom_call.1} parent=51 // pred_region
          %351 = dma.done %s344, 512
        $region56: #{tpu_custom_call.1} parent=51 // pred_fallthru
          _
        %s352 = sand.u32 %s28, 1
        %s353 = scalar_lea.sflag [#allocation6], %s352
        %s354 = sand.u32 %s62, 1
        %s355 = smul.addr %s354, 32
        %s356 = scalar_lea.vmem [#allocation5], %s355
        // Predicated region
        $region57: #{tpu_custom_call.1} parent=51 // pred_check
          %p357 = pneg %p75
        $region58: #{tpu_custom_call.1} parent=51 // pred_check_branch
          %359 = sbr.rel (%p357) target = $region60
        $region59: #{tpu_custom_call.1} parent=51 // pred_region
          %360 = dma.done %s353, 512
        $region60: #{tpu_custom_call.1} parent=51 // pred_fallthru
          _
        // Predicated region
        $region61: #{tpu_custom_call.1} parent=51 // pred_check
          %p361 = pneg %p96
        $region62: #{tpu_custom_call.1} parent=51 // pred_check_branch
          %363 = sbr.rel (%p361) target = $region64
        $region63: #{tpu_custom_call.1} parent=51 // pred_region
          %364 = dma.done [#allocation6], 512
        $region64: #{tpu_custom_call.1} parent=51 // pred_fallthru
          _
        // Predicated region
        $region65: #{tpu_custom_call.1} parent=51 // pred_check
          %p365 = pneg %p138
        $region66: #{tpu_custom_call.1} parent=51 // pred_check_branch
          %367 = sbr.rel (%p365) target = $region68
        $region67: #{tpu_custom_call.1} parent=51 // pred_region
          %368 = dma.done [#allocation9], 1024
        $region68: #{tpu_custom_call.1} parent=51 // pred_fallthru
          _
        // Predicated region
        $region69: #{tpu_custom_call.1} parent=51 // pred_check
          %p369 = pneg %p180
        $region70: #{tpu_custom_call.1} parent=51 // pred_check_branch
          %371 = sbr.rel (%p369) target = $region72
        $region71: #{tpu_custom_call.1} parent=51 // pred_region
          %372 = dma.done [#allocation9], 1024
        $region72: #{tpu_custom_call.1} parent=51 // pred_fallthru
          _
        %s373 = sand.u32 %s36, 1
        %s374 = scalar_lea.sflag [#allocation4], %s373
        %s375 = sand.u32 %s36, 1
        %s376 = smul.addr %s375, 32
        %s377 = scalar_lea.vmem [#allocation3], %s376
        %p378 = pneg %p49
        %p379 = pneg %p46
        %s380 = sand.u32 %s28, 1
        %s381 = scalar_lea.sflag [#allocation6], %s380
        %s382 = sand.u32 %s62, 1
        %s383 = smul.addr %s382, 32
        %s384 = scalar_lea.vmem [#allocation5], %s383
        %p385 = pneg %p75
        %p386 = pneg %p72
        %p387 = pneg %p96
        %p388 = pneg %p93
        %p389 = pneg %p117
        %p390 = pneg %p114
        %p391 = pneg %p138
        %p392 = pneg %p135
        %p393 = pneg %p159
        %p394 = pneg %p156
        %p395 = pneg %p180
        %p396 = pneg %p177
        %p397 = pneg %p201
        %p398 = pneg %p198
        %p399 = pneg %p227
        %p400 = pneg %p224
        %s401 = smul.u32 4, %s28
        %p402 = scmp.lt.s32.totalorder %s401, 7
        %s403 = scalar_select %p402, %s401, 7
        %s404 = smul.addr %s403, 8
        %s405 = scalar_lea.vmem %s8, %s404
        %s406 = smul.u32 4, %s28
        %s407 = smul.u32 4, %s28
        %s408 = smul.u32 4, %s28
        %p409 = scmp.lt.s32.totalorder %s408, 7
        %s410 = scalar_select %p409, %s408, 7
        %s411 = smul.addr %s410, 8
        %s412 = scalar_lea.vmem %s8, %s411
        %s413 = smul.u32 4, %s28
        %v415 = vld [vmem:[%s347] sm:$0xff]
        %v416 = vld [vmem:[%s347 + $0x8] sm:$0xff]
        %v417 = vld [vmem:[%s347 + $0x10] sm:$0xff]
        %v418 = vld [vmem:[%s347 + $0x18] sm:$0xff]
        %v419 = vld [vmem:[%s356] sm:$0xff]
        %v420 = vld [vmem:[%s356 + $0x8] sm:$0xff]
        %v421 = vld [vmem:[%s356 + $0x10] sm:$0xff]
        %v422 = vld [vmem:[%s356 + $0x18] sm:$0xff]
        %v423 = vadd.f32 %v415, %v419
        %v424 = vadd.f32 %v416, %v420
        %v425 = vadd.f32 %v417, %v421
        %v426 = vadd.f32 %v418, %v422
        %v427 = vmul.f32 %v423, 0.5
        %v428 = vmul.f32 %v424, 0.5
        %v429 = vmul.f32 %v425, 0.5
        %v430 = vmul.f32 %v426, 0.5
        %v431 = vmul.f32 %v423, 0.70710677
        %v432 = vmul.f32 %v424, 0.70710677
        %v433 = vmul.f32 %v425, 0.70710677
        %v434 = vmul.f32 %v426, 0.70710677
        %v435 = verf.f32.pop %v431
        %v436 = verf.f32.pop %v432
        %v437 = verf.f32.pop %v433
        %v438 = verf.f32.pop %v434
        %v439 = vadd.f32 %v435, 1.0
        %v440 = vadd.f32 %v436, 1.0
        %v441 = vadd.f32 %v437, 1.0
        %v442 = vadd.f32 %v438, 1.0
        %v443 = vmul.f32 %v427, %v439
        %v444 = vmul.f32 %v428, %v440
        %v445 = vmul.f32 %v429, %v441
        %v446 = vmul.f32 %v430, %v442
        %v447 = vpack.c.bf16 %v444, %v443
        %v448 = vpack.c.bf16 %v446, %v445
        %v449 = vld [vmem:[#allocation7] sm:$0xf]
        %v450 = vld [vmem:[#allocation7 + $0x4] sm:$0xf]
        %v451 = vld [vmem:[#allocation7 + $0x8] sm:$0xf]
        %v452 = vld [vmem:[#allocation7 + $0xc] sm:$0xf]
        %v453 = vld [vmem:[#allocation7 + $0x10] sm:$0xf]
        %v454 = vld [vmem:[#allocation7 + $0x14] sm:$0xf]
        %v455 = vld [vmem:[#allocation7 + $0x18] sm:$0xf]
        %v456 = vld [vmem:[#allocation7 + $0x1c] sm:$0xf]
        %v457 = vld [vmem:[%s3] sm:$0x1]
        %v459 = vlaneseq
        %v460 = vshrl.u32 %v459, 7
        %v461 = vsub.s32 0, %v460
        %v462 = vrot.slane %v457, %v461
        %v472 = vunpack.c.l.b16 %v449
        %v473 = vunpack.c.l.b16 %v450
        %v474 = vunpack.c.l.b16 %v451
        %v475 = vunpack.c.l.b16 %v452
        %v476 = vunpack.c.l.b16 %v453
        %v477 = vunpack.c.l.b16 %v454
        %v478 = vunpack.c.l.b16 %v455
        %v479 = vunpack.c.l.b16 %v456
        %v480 = vpack.c.b16 %v473, %v472
        %v481 = vpack.c.b16 %v475, %v474
        %v482 = vpack.c.b16 %v477, %v476
        %v483 = vpack.c.b16 %v479, %v478
        %vm488 = vcmask 523264
        %v490 = vsel %vm488, %v447, 0
        %v493 = vsel %vm488, %v448, 0
        %495 = vmatprep.subr.bf16.mxu0 0
        %496 = vmatpush1.bf16.msra.mxu0 %v480
        %497 = vmatprep.subr.bf16.mxu0 0
        %498 = vmatpush1.bf16.msra.mxu0 %v481
        %499 = vmatprep.subr.bf16.mxu0 0
        %500 = vmatpush1.bf16.msra.mxu0 %v482
        %501 = vmatprep.subr.bf16.mxu0 0
        %502 = vmatpush1.bf16.msra.mxu0 %v483
        %503 = vmatprep.subr.bf16.mxu0 0
        %504 = vmatpush1.bf16.msra.mxu0 0
        %505 = vmatprep.subr.bf16.mxu0 0
        %506 = vmatpush1.bf16.msra.mxu0 0
        %507 = vmatprep.subr.bf16.mxu0 0
        %508 = vmatpush1.bf16.msra.mxu0 0
        %509 = vmatprep.subr.bf16.mxu0 0
        %510 = vmatpush1.bf16.msra.mxu0 0
        %511 = vmatprep.subr.bf16.mxu0 0
        %512 = vmatpush1.bf16.msra.mxu0 0
        %513 = vmatprep.subr.bf16.mxu0 0
        %514 = vmatpush1.bf16.msra.mxu0 0
        %515 = vmatprep.subr.bf16.mxu0 0
        %516 = vmatpush1.bf16.msra.mxu0 0
        %517 = vmatprep.subr.bf16.mxu0 0
        %518 = vmatpush1.bf16.msra.mxu0 0
        %519 = vmatprep.subr.bf16.mxu0 0
        %520 = vmatpush1.bf16.msra.mxu0 0
        %521 = vmatprep.subr.bf16.mxu0 0
        %522 = vmatpush1.bf16.msra.mxu0 0
        %523 = vmatprep.subr.bf16.mxu0 0
        %524 = vmatpush1.bf16.msra.mxu0 0
        %525 = vmatprep.subr.bf16.mxu0 0
        %526 = vmatpush1.bf16.msra.mxu0 0
        %527 = vmatprep.mubr.bf16.mxu0 0
        %528 = vmatmul.mubr.bf16.gmra.mrb[0].mxu0 %v490
        %v529 = vpop.f32.mrb[0].mxu0
        %v530 = vadd.f32 %v462, %v529
        %v531 = vpop.f32.mrb[0].mxu0
        %v532 = vpop.f32.mrb[0].mxu0
        %v533 = vadd.f32 %v462, %v532
        %v534 = vpop.f32.mrb[0].mxu0
        %535 = vmatprep.mubr.bf16.mxu0 0
        %536 = vmatmul.mubr.bf16.gmra.mrb[0].mxu0 %v493
        %v537 = vpop.f32.mrb[0].mxu0
        %v538 = vadd.f32 %v462, %v537
        %v539 = vpop.f32.mrb[0].mxu0
        %v540 = vpop.f32.mrb[0].mxu0
        %v541 = vadd.f32 %v462, %v540
        %v542 = vpop.f32.mrb[0].mxu0
        %543 = vdwg.mxu0
        %v544 = vmul.f32 %v530, 0.5
        %v545 = vmul.f32 %v533, 0.5
        %v546 = vmul.f32 %v538, 0.5
        %v547 = vmul.f32 %v541, 0.5
        %v548 = vmul.f32 %v530, 0.70710677
        %v549 = vmul.f32 %v533, 0.70710677
        %v550 = vmul.f32 %v538, 0.70710677
        %v551 = vmul.f32 %v541, 0.70710677
        %v552 = verf.f32.pop %v548
        %v553 = verf.f32.pop %v549
        %v554 = verf.f32.pop %v550
        %v555 = verf.f32.pop %v551
        %v556 = vadd.f32 %v552, 1.0
        %v557 = vadd.f32 %v553, 1.0
        %v558 = vadd.f32 %v554, 1.0
        %v559 = vadd.f32 %v555, 1.0
        %v560 = vmul.f32 %v544, %v556
        %v561 = vmul.f32 %v545, %v557
        %v562 = vmul.f32 %v546, %v558
        %v563 = vmul.f32 %v547, %v559
        %v564 = vpack.c.bf16 %v561, %v560
        %v565 = vpack.c.bf16 %v563, %v562
        %v566 = vld [vmem:[#allocation8] sm:$0xf]
        %v567 = vld [vmem:[#allocation8 + $0x4] sm:$0xf]
        %v568 = vld [vmem:[#allocation8 + $0x8] sm:$0xf]
        %v569 = vld [vmem:[#allocation8 + $0xc] sm:$0xf]
        %v570 = vld [vmem:[#allocation8 + $0x10] sm:$0xf]
        %v571 = vld [vmem:[#allocation8 + $0x14] sm:$0xf]
        %v572 = vld [vmem:[#allocation8 + $0x18] sm:$0xf]
        %v573 = vld [vmem:[#allocation8 + $0x1c] sm:$0xf]
        %v574 = vld [vmem:[#allocation8 + $0x20] sm:$0xf]
        %v575 = vld [vmem:[#allocation8 + $0x24] sm:$0xf]
        %v576 = vld [vmem:[#allocation8 + $0x28] sm:$0xf]
        %v577 = vld [vmem:[#allocation8 + $0x2c] sm:$0xf]
        %v578 = vld [vmem:[#allocation8 + $0x30] sm:$0xf]
        %v579 = vld [vmem:[#allocation8 + $0x34] sm:$0xf]
        %v580 = vld [vmem:[#allocation8 + $0x38] sm:$0xf]
        %v581 = vld [vmem:[#allocation8 + $0x3c] sm:$0xf]
        %v582 = vld [vmem:[%s5] sm:$0x1]
        %v584 = vlaneseq
        %v585 = vshrl.u32 %v584, 7
        %v586 = vsub.s32 0, %v585
        %v587 = vrot.slane %v582, %v586
        %v605 = vunpack.c.l.b16 %v566
        %v606 = vunpack.c.l.b16 %v567
        %v607 = vunpack.c.l.b16 %v568
        %v608 = vunpack.c.l.b16 %v569
        %v609 = vunpack.c.l.b16 %v570
        %v610 = vunpack.c.l.b16 %v571
        %v611 = vunpack.c.l.b16 %v572
        %v612 = vunpack.c.l.b16 %v573
        %v613 = vunpack.c.l.b16 %v574
        %v614 = vunpack.c.l.b16 %v575
        %v615 = vunpack.c.l.b16 %v576
        %v616 = vunpack.c.l.b16 %v577
        %v617 = vunpack.c.l.b16 %v578
        %v618 = vunpack.c.l.b16 %v579
        %v619 = vunpack.c.l.b16 %v580
        %v620 = vunpack.c.l.b16 %v581
        %v621 = vpack.c.b16 %v606, %v605
        %v622 = vpack.c.b16 %v608, %v607
        %v623 = vpack.c.b16 %v610, %v609
        %v624 = vpack.c.b16 %v612, %v611
        %v625 = vpack.c.b16 %v614, %v613
        %v626 = vpack.c.b16 %v616, %v615
        %v627 = vpack.c.b16 %v618, %v617
        %v628 = vpack.c.b16 %v620, %v619
        %637 = vmatprep.subr.bf16.mxu0 0
        %638 = vmatpush1.bf16.msra.mxu0 %v621
        %639 = vmatprep.subr.bf16.mxu0 0
        %640 = vmatpush1.bf16.msra.mxu0 %v622
        %641 = vmatprep.subr.bf16.mxu0 0
        %642 = vmatpush1.bf16.msra.mxu0 %v623
        %643 = vmatprep.subr.bf16.mxu0 0
        %644 = vmatpush1.bf16.msra.mxu0 %v624
        %645 = vmatprep.subr.bf16.mxu0 0
        %646 = vmatpush1.bf16.msra.mxu0 %v625
        %647 = vmatprep.subr.bf16.mxu0 0
        %648 = vmatpush1.bf16.msra.mxu0 %v626
        %649 = vmatprep.subr.bf16.mxu0 0
        %650 = vmatpush1.bf16.msra.mxu0 %v627
        %651 = vmatprep.subr.bf16.mxu0 0
        %652 = vmatpush1.bf16.msra.mxu0 %v628
        %653 = vmatprep.subr.bf16.mxu0 0
        %654 = vmatpush1.bf16.msra.mxu0 0
        %655 = vmatprep.subr.bf16.mxu0 0
        %656 = vmatpush1.bf16.msra.mxu0 0
        %657 = vmatprep.subr.bf16.mxu0 0
        %658 = vmatpush1.bf16.msra.mxu0 0
        %659 = vmatprep.subr.bf16.mxu0 0
        %660 = vmatpush1.bf16.msra.mxu0 0
        %661 = vmatprep.subr.bf16.mxu0 0
        %662 = vmatpush1.bf16.msra.mxu0 0
        %663 = vmatprep.subr.bf16.mxu0 0
        %664 = vmatpush1.bf16.msra.mxu0 0
        %665 = vmatprep.subr.bf16.mxu0 0
        %666 = vmatpush1.bf16.msra.mxu0 0
        %667 = vmatprep.subr.bf16.mxu0 0
        %668 = vmatpush1.bf16.msra.mxu0 0
        %669 = vmatprep.mubr.bf16.mxu0 0
        %670 = vmatmul.mubr.bf16.gmra.mrb[0].mxu0 %v564
        %v671 = vpop.f32.mrb[0].mxu0
        %v672 = vadd.f32 %v587, %v671
        %v673 = vpop.f32.mrb[0].mxu0
        %v674 = vpop.f32.mrb[0].mxu0
        %v675 = vadd.f32 %v587, %v674
        %v676 = vpop.f32.mrb[0].mxu0
        %677 = vmatprep.mubr.bf16.mxu0 0
        %678 = vmatmul.mubr.bf16.gmra.mrb[0].mxu0 %v565
        %v679 = vpop.f32.mrb[0].mxu0
        %v680 = vadd.f32 %v587, %v679
        %v681 = vpop.f32.mrb[0].mxu0
        %v682 = vpop.f32.mrb[0].mxu0
        %v683 = vadd.f32 %v587, %v682
        %v684 = vpop.f32.mrb[0].mxu0
        %685 = vdwg.mxu0
        %v686 = vmul.f32 %v672, 0.5
        %v687 = vmul.f32 %v675, 0.5
        %v688 = vmul.f32 %v680, 0.5
        %v689 = vmul.f32 %v683, 0.5
        %v690 = vmul.f32 %v672, 0.70710677
        %v691 = vmul.f32 %v675, 0.70710677
        %v692 = vmul.f32 %v680, 0.70710677
        %v693 = vmul.f32 %v683, 0.70710677
        %v694 = verf.f32.pop %v690
        %v695 = verf.f32.pop %v691
        %v696 = verf.f32.pop %v692
        %v697 = verf.f32.pop %v693
        %v698 = vadd.f32 %v694, 1.0
        %v699 = vadd.f32 %v695, 1.0
        %v700 = vadd.f32 %v696, 1.0
        %v701 = vadd.f32 %v697, 1.0
        %v702 = vmul.f32 %v686, %v698
        %v703 = vmul.f32 %v687, %v699
        %v704 = vmul.f32 %v688, %v700
        %v705 = vmul.f32 %v689, %v701
        %v706 = vpack.c.bf16 %v703, %v702
        %v707 = vpack.c.bf16 %v705, %v704
        %v708 = vld [vmem:[#allocation10] sm:$0xf]
        %v709 = vld [vmem:[#allocation10 + $0x4] sm:$0xf]
        %v710 = vld [vmem:[#allocation10 + $0x8] sm:$0xf]
        %v711 = vld [vmem:[#allocation10 + $0xc] sm:$0xf]
        %v712 = vld [vmem:[#allocation10 + $0x10] sm:$0xf]
        %v713 = vld [vmem:[#allocation10 + $0x14] sm:$0xf]
        %v714 = vld [vmem:[#allocation10 + $0x18] sm:$0xf]
        %v715 = vld [vmem:[#allocation10 + $0x1c] sm:$0xf]
        %v716 = vld [vmem:[#allocation10 + $0x20] sm:$0xf]
        %v717 = vld [vmem:[#allocation10 + $0x24] sm:$0xf]
        %v718 = vld [vmem:[#allocation10 + $0x28] sm:$0xf]
        %v719 = vld [vmem:[#allocation10 + $0x2c] sm:$0xf]
        %v720 = vld [vmem:[#allocation10 + $0x30] sm:$0xf]
        %v721 = vld [vmem:[#allocation10 + $0x34] sm:$0xf]
        %v722 = vld [vmem:[#allocation10 + $0x38] sm:$0xf]
        %v723 = vld [vmem:[#allocation10 + $0x3c] sm:$0xf]
        %v740 = vunpack.c.l.b16 %v708
        %v741 = vunpack.c.l.b16 %v709
        %v742 = vunpack.c.l.b16 %v710
        %v743 = vunpack.c.l.b16 %v711
        %v744 = vunpack.c.l.b16 %v712
        %v745 = vunpack.c.l.b16 %v713
        %v746 = vunpack.c.l.b16 %v714
        %v747 = vunpack.c.l.b16 %v715
        %v748 = vunpack.c.l.b16 %v716
        %v749 = vunpack.c.l.b16 %v717
        %v750 = vunpack.c.l.b16 %v718
        %v751 = vunpack.c.l.b16 %v719
        %v752 = vunpack.c.l.b16 %v720
        %v753 = vunpack.c.l.b16 %v721
        %v754 = vunpack.c.l.b16 %v722
        %v755 = vunpack.c.l.b16 %v723
        %v756 = vpack.c.b16 %v741, %v740
        %v757 = vpack.c.b16 %v743, %v742
        %v758 = vpack.c.b16 %v745, %v744
        %v759 = vpack.c.b16 %v747, %v746
        %v760 = vpack.c.b16 %v749, %v748
        %v761 = vpack.c.b16 %v751, %v750
        %v762 = vpack.c.b16 %v753, %v752
        %v763 = vpack.c.b16 %v755, %v754
        %772 = vmatprep.subr.bf16.mxu0 0
        %773 = vmatpush1.bf16.msra.mxu0 %v756
        %774 = vmatprep.subr.bf16.mxu0 0
        %775 = vmatpush1.bf16.msra.mxu0 %v757
        %776 = vmatprep.subr.bf16.mxu0 0
        %777 = vmatpush1.bf16.msra.mxu0 %v758
        %778 = vmatprep.subr.bf16.mxu0 0
        %779 = vmatpush1.bf16.msra.mxu0 %v759
        %780 = vmatprep.subr.bf16.mxu0 0
        %781 = vmatpush1.bf16.msra.mxu0 %v760
        %782 = vmatprep.subr.bf16.mxu0 0
        %783 = vmatpush1.bf16.msra.mxu0 %v761
        %784 = vmatprep.subr.bf16.mxu0 0
        %785 = vmatpush1.bf16.msra.mxu0 %v762
        %786 = vmatprep.subr.bf16.mxu0 0
        %787 = vmatpush1.bf16.msra.mxu0 %v763
        %788 = vmatprep.subr.bf16.mxu0 0
        %789 = vmatpush1.bf16.msra.mxu0 0
        %790 = vmatprep.subr.bf16.mxu0 0
        %791 = vmatpush1.bf16.msra.mxu0 0
        %792 = vmatprep.subr.bf16.mxu0 0
        %793 = vmatpush1.bf16.msra.mxu0 0
        %794 = vmatprep.subr.bf16.mxu0 0
        %795 = vmatpush1.bf16.msra.mxu0 0
        %796 = vmatprep.subr.bf16.mxu0 0
        %797 = vmatpush1.bf16.msra.mxu0 0
        %798 = vmatprep.subr.bf16.mxu0 0
        %799 = vmatpush1.bf16.msra.mxu0 0
        %800 = vmatprep.subr.bf16.mxu0 0
        %801 = vmatpush1.bf16.msra.mxu0 0
        %802 = vmatprep.subr.bf16.mxu0 0
        %803 = vmatpush1.bf16.msra.mxu0 0
        %804 = vmatprep.mubr.bf16.mxu0 0
        %805 = vmatmul.mubr.bf16.gmra.mrb[0].mxu0 %v706
        %v806 = vpop.f32.mrb[0].mxu0
        %v807 = vadd.f32 0.0, %v806
        %v808 = vpop.f32.mrb[0].mxu0
        %v809 = vpop.f32.mrb[0].mxu0
        %v810 = vadd.f32 0.0, %v809
        %v811 = vpop.f32.mrb[0].mxu0
        %812 = vmatprep.mubr.bf16.mxu0 0
        %813 = vmatmul.mubr.bf16.gmra.mrb[0].mxu0 %v707
        %v814 = vpop.f32.mrb[0].mxu0
        %v815 = vadd.f32 0.0, %v814
        %v816 = vpop.f32.mrb[0].mxu0
        %v817 = vpop.f32.mrb[0].mxu0
        %v818 = vadd.f32 0.0, %v817
        %v819 = vpop.f32.mrb[0].mxu0
        %820 = vdwg.mxu0
        %v821 = vld [vmem:[#allocation2] sm:$0x1]
        %v823 = vlaneseq
        %v824 = vshrl.u32 %v823, 7
        %v825 = vsub.s32 0, %v824
        %v826 = vrot.slane %v821, %v825
        %v828 = vadd.f32 %v807, %v826
        %v829 = vadd.f32 %v810, %v826
        %v830 = vadd.f32 %v815, %v826
        %v831 = vadd.f32 %v818, %v826
        %vm832 = vcmask 7168
        %833 = vst.msk [vmem:[%s412] sm:$0xff] %vm832, %v828
        %834 = vst.msk [vmem:[%s412 + $0x8] sm:$0xff] %vm832, %v829
        %835 = vst.msk [vmem:[%s412 + $0x10] sm:$0xff] %vm832, %v830
        %836 = vst.msk [vmem:[%s412 + $0x18] sm:$0xff] %vm832, %v831
        %s837 = smul.u32 4, %s28
        %p838 = scmp.lt.s32.totalorder %s837, 7
        %s839 = scalar_select %p838, %s837, 7
        %s840 = smul.addr %s839, 8
        %s841 = scalar_lea.vmem %s8, %s840
        // Predicated region
        $region73: #{tpu_custom_call.1} parent=51 // pred_check
          %p842 = pneg %p224
        $region74: #{tpu_custom_call.1} parent=51 // pred_check_branch
          %844 = sbr.rel (%p842) target = $region76
        $region75: #{tpu_custom_call.1} parent=51 // pred_region
          %s845 = smul.u32 4, %s28
        $region76: #{tpu_custom_call.1} parent=51 // pred_fallthru
          _
      $region52: #{tpu_custom_call.1} parent=5 // pred_fallthru
        _
      %p846 = scmp.le.s32.totalorder 2, %s23
      // Predicated region
      $region77: #{tpu_custom_call.1} parent=5 // pred_check
        %p847 = pneg %p846
      $region78: #{tpu_custom_call.1} parent=5 // pred_check_branch
        %849 = sbr.rel (%p847) target = $region80
      $region79: #{tpu_custom_call.1} parent=5 // pred_region
        %s850 = ssub.s32 %s23, 2
        // Predicated region
        $region81: #{tpu_custom_call.1} parent=79 // pred_check
          %p851 = pneg %p230
        $region82: #{tpu_custom_call.1} parent=79 // pred_check_branch
          %853 = sbr.rel (%p851) target = $region84
        $region83: #{tpu_custom_call.1} parent=79 // pred_region
          %s854 = smul.u32 4, %s29
          %p855 = scmp.lt.s32.totalorder %s854, 7
          %s856 = scalar_select %p855, %s854, 7
          %s857 = smul.addr %s856, 8
          %s858 = scalar_lea.vmem %s8, %s857
        $region84: #{tpu_custom_call.1} parent=79 // pred_fallthru
          _
      $region80: #{tpu_custom_call.1} parent=5 // pred_fallthru
        _
    $region6: #{tpu_custom_call.1} parent=1 // loop_footer
      %s27 = sadd.s32 1, %s23
    $region7: #{tpu_custom_call.1} parent=1 // loop_footer_branch
      %22 = sbr.rel target = $region3
    $region8: #{tpu_custom_call.1} parent=1 // loop_exit
      _
    %859 = vsyncpa [#allocation4], 1
    %s860 = scalar_lea.sflag [#allocation4], 1
    %861 = vsyncpa %s860, 1
    %862 = vsyncpa [#allocation6], 1
    %s863 = scalar_lea.sflag [#allocation6], 1
    %864 = vsyncpa %s863, 1
    %865 = vsyncpa [#allocation9], 1

</llo_original>
